<compile_context>
chip_gen: v7x
topology: tpu7x:2x2x1
jax: 0.10.0
libtpu: 0.0.40
codegen_flags: <defaults>
</compile_context>

<pallas_src>
import jax
import jax.numpy as jnp
from jax.experimental import pallas as pl
from jax.experimental.pallas import tpu as pltpu

NB_WALK_SIZE = 5  # from _get_config(): config['nb_walk_size'] = 5
# TODO(synk): neighbor sampling (sample_nb_nodes_with_similar_score) and the
# edges_and_nb_dict bookkeeping are host-side, data-dependent Python; they are
# assumed to have already produced the dense [E, K, D] neighbor tensor.


def _nb_mean_kernel(nb_ref, out_ref):
    """nb_ref: (tile_e, K*D) lane-dense neighbor slab; out_ref: (tile_e, D)."""
    d = out_ref.shape[-1]
    k = nb_ref.shape[-1] // d
    # Unrolled VALU accumulation over K D-wide lane slices, f32 accumulator.
    acc = nb_ref[:, 0:d].astype(jnp.float32)
    for j in range(1, k):
        acc = acc + nb_ref[:, j * d:(j + 1) * d].astype(jnp.float32)
    out_ref[...] = (acc * (1.0 / k)).astype(out_ref.dtype)


def _choose_tile_e(E, requested):
    """Largest usable row tile: full array if small, else a multiple of 8."""
    if E <= requested:
        return E                      # block == full array dim: always legal
    t = (requested // 8) * 8          # sublane-aligned tile
    return max(t, 8)


def hete_edge_mean_aggregate(self_attr, nb_attr, *, tile_e=1024,
                             vmem_limit_bytes=None):
    """self_attr: [E, D], nb_attr: [E, K, D].

    Returns (edges_attr [E, D], edges_nb_attr [E, D]) matching the PyTorch
    forward's (torch.stack(edges_attr), torch.stack(edges_nb_attr)).
    """
    E, D = self_attr.shape
    E2, K, D2 = nb_attr.shape
    assert E == E2 and D == D2

    # Free, contiguous reshape: put all K*D neighbor features on the lane axis.
    nb_flat = nb_attr.reshape(E, K * D)

    te = _choose_tile_e(E, tile_e)
    grid = (pl.cdiv(E, te),)          # partial last block handled by Pallas

    compiler_params = pltpu.CompilerParams(
        dimension_semantics=("parallel",),
        vmem_limit_bytes=vmem_limit_bytes,
    )

    edges_nb_attr = pl.pallas_call(
        _nb_mean_kernel,
        out_shape=jax.ShapeDtypeStruct((E, D), nb_attr.dtype),
        grid_spec=pltpu.PrefetchScalarGridSpec(
            num_scalar_prefetch=0,
            grid=grid,
            in_specs=[pl.BlockSpec((te, K * D), lambda i: (i, 0))],
            out_specs=pl.BlockSpec((te, D), lambda i: (i, 0)),
        ),
        compiler_params=compiler_params,
    )(nb_flat)

    # torch.stack(edges_attr) is just the self attributes — no kernel copy.
    return self_attr, edges_nb_attr


if __name__ == "__main__":
    key = jax.random.PRNGKey(0)
    E = 16                      # number of edges in the batch
    K = 2 * NB_WALK_SIZE        # 10 neighbor edges per edge (node1 + node2 walks)
    D = 128                     # combined-attribute feature dimension

    k1, k2 = jax.random.split(key)
    # Deterministic synthetic "dataset.get_combine_attr_from_nodes" outputs.
    self_attr = jax.random.normal(k1, (E, D), dtype=jnp.float32)
    nb_attr = jax.random.normal(k2, (E, K, D), dtype=jnp.float32)

    edges_attr, edges_nb_attr = hete_edge_mean_aggregate(self_attr, nb_attr)
    jax.block_until_ready((edges_attr, edges_nb_attr))

    # Pure-JAX reference check of the forward semantics.
    ref_self = self_attr
    ref_nb = jnp.sum(nb_attr, axis=1) / K
    assert jnp.allclose(edges_attr, ref_self, atol=1e-6)
    assert jnp.allclose(edges_nb_attr, ref_nb, atol=1e-5)

    print("KERNEL_OK")
</pallas_src>

<mosaic_0001>
module attributes {stable_mosaic.version = 11 : i64} {
  func.func @_nb_mean_kernel(%arg0: i32, %arg1: memref<16x1280xf32, #tpu.memory_space<vmem>>, %arg2: memref<16x128xf32, #tpu.memory_space<vmem>>) attributes {dimension_semantics = [#tpu.dimension_semantics<parallel>], iteration_bounds = array<i64: 1>, scalar_prefetch = 0 : i64, scratch_operands = 0 : i64, tpu.core_type = #tpu.core_type<tc>, window_params = [{transform_indices = @transform_0, window_bounds = array<i64: 16, 1280>}, {transform_indices = @transform_1, window_bounds = array<i64: 16, 128>}]} {
    %c0 = arith.constant 0 : index
    %c0_0 = arith.constant 0 : index
    %0 = vector.load %arg1[%c0, %c0_0] : memref<16x1280xf32, #tpu.memory_space<vmem>>, vector<16x128xf32>
    %c0_1 = arith.constant 0 : index
    %c128 = arith.constant 128 : index
    %1 = vector.load %arg1[%c0_1, %c128] : memref<16x1280xf32, #tpu.memory_space<vmem>>, vector<16x128xf32>
    %2 = arith.addf %0, %1 : vector<16x128xf32>
    %c0_2 = arith.constant 0 : index
    %c256 = arith.constant 256 : index
    %3 = vector.load %arg1[%c0_2, %c256] : memref<16x1280xf32, #tpu.memory_space<vmem>>, vector<16x128xf32>
    %4 = arith.addf %2, %3 : vector<16x128xf32>
    %c0_3 = arith.constant 0 : index
    %c384 = arith.constant 384 : index
    %5 = vector.load %arg1[%c0_3, %c384] : memref<16x1280xf32, #tpu.memory_space<vmem>>, vector<16x128xf32>
    %6 = arith.addf %4, %5 : vector<16x128xf32>
    %c0_4 = arith.constant 0 : index
    %c512 = arith.constant 512 : index
    %7 = vector.load %arg1[%c0_4, %c512] : memref<16x1280xf32, #tpu.memory_space<vmem>>, vector<16x128xf32>
    %8 = arith.addf %6, %7 : vector<16x128xf32>
    %c0_5 = arith.constant 0 : index
    %c640 = arith.constant 640 : index
    %9 = vector.load %arg1[%c0_5, %c640] : memref<16x1280xf32, #tpu.memory_space<vmem>>, vector<16x128xf32>
    %10 = arith.addf %8, %9 : vector<16x128xf32>
    %c0_6 = arith.constant 0 : index
    %c768 = arith.constant 768 : index
    %11 = vector.load %arg1[%c0_6, %c768] : memref<16x1280xf32, #tpu.memory_space<vmem>>, vector<16x128xf32>
    %12 = arith.addf %10, %11 : vector<16x128xf32>
    %c0_7 = arith.constant 0 : index
    %c896 = arith.constant 896 : index
    %13 = vector.load %arg1[%c0_7, %c896] : memref<16x1280xf32, #tpu.memory_space<vmem>>, vector<16x128xf32>
    %14 = arith.addf %12, %13 : vector<16x128xf32>
    %c0_8 = arith.constant 0 : index
    %c1024 = arith.constant 1024 : index
    %15 = vector.load %arg1[%c0_8, %c1024] : memref<16x1280xf32, #tpu.memory_space<vmem>>, vector<16x128xf32>
    %16 = arith.addf %14, %15 : vector<16x128xf32>
    %c0_9 = arith.constant 0 : index
    %c1152 = arith.constant 1152 : index
    %17 = vector.load %arg1[%c0_9, %c1152] : memref<16x1280xf32, #tpu.memory_space<vmem>>, vector<16x128xf32>
    %18 = arith.addf %16, %17 : vector<16x128xf32>
    %cst = arith.constant 1.000000e-01 : f32
    %19 = vector.broadcast %cst : f32 to vector<16x128xf32>
    %20 = arith.mulf %18, %19 : vector<16x128xf32>
    %c0_10 = arith.constant 0 : index
    %c0_11 = arith.constant 0 : index
    %21 = vector.load %arg2[%c0_10, %c0_11] : memref<16x128xf32, #tpu.memory_space<vmem>>, vector<16x128xf32>
    tpu.vector_store %arg2[%c0_10, %c0_11], %20 {strides = array<i32>} : memref<16x128xf32, #tpu.memory_space<vmem>>, vector<16x128xf32>,
    return
  }
  func.func @transform_0(%arg0: i32) -> (i32, i32) {
    %c0_i32 = arith.constant 0 : i32
    %c0_i32_0 = arith.constant 0 : i32
    return %arg0, %c0_i32 : i32, i32
  }
  func.func @transform_1(%arg0: i32) -> (i32, i32) {
    %c0_i32 = arith.constant 0 : i32
    %c0_i32_0 = arith.constant 0 : i32
    return %arg0, %c0_i32 : i32, i32
  }
}

</mosaic_0001>

<llo_original>
// kernel: tpu_custom_call.1
$region0: #{tpu_custom_call.1}
  #allocation0 [shape = 'u32[]', space=smem, size = 0x4, offset = 0x4, fixed_abs, tag = 'smem constant byte address 0x4 - core index']
  #allocation1 [shape = 'u32[144,128]{1,0:T(1,128)}', space=vmem, size = 0x12000, scoped, tag = 'internal scratch']
  %s0 = inlined_call_operand.hbm [shape: f32[16,1280], index: 0, kind: input, shape index: {}]
  %s1 = inlined_call_operand.hbm [shape: f32[16,128], index: 1, kind: output, shape index: {}]
  %s2 = sld [smem:[#allocation0]]
  $region18: #{tpu_custom_call.1} parent=0
    _
  %s4 = ssub.s32 1, %s2
  %s5 = scalar_select 0, %s4, %s2
  $region1: #{tpu_custom_call.1} parent=0
    #allocation2 [shape = 'u8[81920]{0}', space=vmem, size = 0x14000, scoped, tag = 'input window, operand 0, single buffered']
    #allocation3 [shape = 's32[1]{0}', space=sflag, size = 0x4, scoped, tag = 'scoped memory for tpu_custom_call.1']
    #allocation4 [shape = 's32[1]{0}', space=sflag, size = 0x4, scoped, tag = 'scoped memory for tpu_custom_call.1']
    #allocation5 [shape = 'u8[8192]{0}', space=vmem, size = 0x2000, scoped, tag = 'output window, operand 0, single buffered']
    %6 = vsyncpa [#allocation3], 0
    %7 = vsyncpa [#allocation4], 0
    // Predicated region
    $region2: #{tpu_custom_call.1} parent=1 // pred_check
      _
    $region3: #{tpu_custom_call.1} parent=1 // pred_check_branch
      %9 = sbr.rel (0) target = $region5
    $region4: #{tpu_custom_call.1} parent=1 // pred_region
      %s11 = ssub.s32 2560, 2560
      %12 = vsyncadd [#allocation3], %s11
      %s13 = sshll.u32 [#allocation2], 4
      %s14 = int_to_ptr.vmem [resolvable:$true] %s13
      %19 = dma.hbm_to_vmem [thread:$0]  %s0, 2560, %s14, [#allocation3], 1280, 1280, 80
    $region5: #{tpu_custom_call.1} parent=1 // pred_fallthru
      _
    // Predicated region
    $region6: #{tpu_custom_call.1} parent=1 // pred_check
      _
    $region7: #{tpu_custom_call.1} parent=1 // pred_check_branch
      %21 = sbr.rel (0) target = $region9
    $region8: #{tpu_custom_call.1} parent=1 // pred_region
      %22 = dma.done [#allocation3], 2560
    $region9: #{tpu_custom_call.1} parent=1 // pred_fallthru
      _
    %v23 = vld [vmem:[#allocation2] sm:$0xff]
    %v24 = vld [vmem:[#allocation2 + $0x50] sm:$0xff]
    %v25 = vld [vmem:[#allocation2 + $0x8] sm:$0xff]
    %v26 = vld [vmem:[#allocation2 + $0x58] sm:$0xff]
    %v27 = vadd.f32 %v23, %v25
    %v28 = vadd.f32 %v24, %v26
    %v29 = vld [vmem:[#allocation2 + $0x10] sm:$0xff]
    %v30 = vld [vmem:[#allocation2 + $0x60] sm:$0xff]
    %v31 = vadd.f32 %v27, %v29
    %v32 = vadd.f32 %v28, %v30
    %v33 = vld [vmem:[#allocation2 + $0x18] sm:$0xff]
    %v34 = vld [vmem:[#allocation2 + $0x68] sm:$0xff]
    %v35 = vadd.f32 %v31, %v33
    %v36 = vadd.f32 %v32, %v34
    %v37 = vld [vmem:[#allocation2 + $0x20] sm:$0xff]
    %v38 = vld [vmem:[#allocation2 + $0x70] sm:$0xff]
    %v39 = vadd.f32 %v35, %v37
    %v40 = vadd.f32 %v36, %v38
    %v41 = vld [vmem:[#allocation2 + $0x28] sm:$0xff]
    %v42 = vld [vmem:[#allocation2 + $0x78] sm:$0xff]
    %v43 = vadd.f32 %v39, %v41
    %v44 = vadd.f32 %v40, %v42
    %v45 = vld [vmem:[#allocation2 + $0x30] sm:$0xff]
    %v46 = vld [vmem:[#allocation2 + $0x80] sm:$0xff]
    %v47 = vadd.f32 %v43, %v45
    %v48 = vadd.f32 %v44, %v46
    %v49 = vld [vmem:[#allocation2 + $0x38] sm:$0xff]
    %v50 = vld [vmem:[#allocation2 + $0x88] sm:$0xff]
    %v51 = vadd.f32 %v47, %v49
    %v52 = vadd.f32 %v48, %v50
    %v53 = vld [vmem:[#allocation2 + $0x40] sm:$0xff]
    %v54 = vld [vmem:[#allocation2 + $0x90] sm:$0xff]
    %v55 = vadd.f32 %v51, %v53
    %v56 = vadd.f32 %v52, %v54
    %v57 = vld [vmem:[#allocation2 + $0x48] sm:$0xff]
    %v58 = vld [vmem:[#allocation2 + $0x98] sm:$0xff]
    %v59 = vadd.f32 %v55, %v57
    %v60 = vadd.f32 %v56, %v58
    %v61 = vmul.f32 %v59, 0.1
    %v62 = vmul.f32 %v60, 0.1
    %63 = vst [vmem:[#allocation5] sm:$0xff] %v61
    %64 = vst [vmem:[#allocation5 + $0x8] sm:$0xff] %v62
    // Predicated region
    $region10: #{tpu_custom_call.1} parent=1 // pred_check
      _
    $region11: #{tpu_custom_call.1} parent=1 // pred_check_branch
      %66 = sbr.rel (0) target = $region13
    $region12: #{tpu_custom_call.1} parent=1 // pred_region
      %s68 = ssub.s32 256, 256
      %69 = vsyncadd [#allocation4], %s68
      %s70 = sshll.u32 [#allocation5], 4
      %s71 = int_to_ptr.vmem [resolvable:$true] %s70
      %76 = dma.vmem_to_hbm [thread:$0]  %s71, 256, %s1, [#allocation4], 128, 128, 8
    $region13: #{tpu_custom_call.1} parent=1 // pred_fallthru
      _
    // Predicated region
    $region14: #{tpu_custom_call.1} parent=1 // pred_check
      _
    $region15: #{tpu_custom_call.1} parent=1 // pred_check_branch
      %78 = sbr.rel (0) target = $region17
    $region16: #{tpu_custom_call.1} parent=1 // pred_region
      %79 = dma.done [#allocation4], 256
    $region17: #{tpu_custom_call.1} parent=1 // pred_fallthru
      _
    %80 = vsyncpa [#allocation3], 1
    %81 = vsyncpa [#allocation4], 1

</llo_original>
